<compile_context>
chip_gen: v7x
topology: tpu7x:2x2x1
jax: 0.10.0
libtpu: 0.0.40
codegen_flags: <defaults>
</compile_context>

<pallas_src>
import jax
import jax.numpy as jnp
from jax.experimental import pallas as pl
from jax.experimental.pallas import tpu as pltpu

_MAX_LANE_TILE = 16384  # multiple of 128


def _normalize_kernel(params_ref, x_ref, o_ref):
    # params_ref: (TR, 2) f32 — column 0 = 1/std, column 1 = -mean/std.
    # x_ref / o_ref: (TR, TL) tiles.
    scale = params_ref[:, 0:1]
    bias = params_ref[:, 1:2]
    x = x_ref[...].astype(jnp.float32)
    o_ref[...] = (x * scale + bias).astype(o_ref.dtype)


def _hw_config():
    """Generation-aware (tile_budget, vmem_limit, min_parallel_steps, triple_buffer)."""
    vmem_bytes = None
    try:
        vmem_bytes = getattr(pltpu.get_tpu_info(), "vmem_capacity_bytes", None)
    except Exception:
        vmem_bytes = None
    if vmem_bytes is not None and vmem_bytes >= 96 * 1024 * 1024:
        # v5e / v6e: 128 MiB VMEM, single TensorCore -> bigger tiles, no core split needed.
        return 8 * 1024 * 1024, 64 * 1024 * 1024, 1, False
    # v7x (64 MiB VMEM, 2 TCs) or unknown hardware: conservative budget, keep
    # >= 4 row-tile steps so the parallel axis can be sharded across cores.
    is_v7x = vmem_bytes is not None
    return 4 * 1024 * 1024, 32 * 1024 * 1024, 4, is_v7x


def _pick_tiles(rows, lanes, itemsize, tile_budget, min_parallel_steps):
    """Pick (TR, TL) respecting the (8, 128) rule, a VMEM budget, and core split."""
    # Lane tile: full last dim unless it is a huge 128-multiple.
    if lanes % 128 == 0 and lanes > _MAX_LANE_TILE:
        tl = _MAX_LANE_TILE
    else:
        tl = lanes  # full last dim (always legal)
        # TODO(synk): pad lanes to a 128-multiple if a non-aligned last dim ever
        # gets large enough that a single full-lane tile overflows VMEM.

    if rows <= 8:
        return rows, tl

    # Row tile: as many rows as fit the per-tile byte budget...
    tr = tile_budget // max(1, tl * itemsize)
    # ...but guarantee >= min_parallel_steps grid steps along the row axis
    # (v7x megacore sharding); v5e/v6e use min_parallel_steps == 1.
    if min_parallel_steps > 1:
        tr = min(tr, max(8, ((rows // min_parallel_steps) // 8) * 8))
    tr = max(8, min(tr, rows))
    tr = (tr // 8) * 8
    return tr, tl


def normalize_layer(x, mean, std, *, donate_input=False):
    """(x - mean[c]) / std[c] for NCHW input x, per-channel mean/std."""
    N, C, H, W = x.shape
    mean_f = jnp.asarray(mean, jnp.float32).reshape(C)
    std_f = jnp.asarray(std, jnp.float32).reshape(C)

    # Folded FMA: y = x * (1/std) + (-mean/std).  Differs from (x-mean)/std by
    # one rounding step (fine at f32 tolerance); std == 0 -> inf, same as ref.
    scale_c = 1.0 / std_f
    bias_c = -mean_f / std_f

    # PyTorch Normalize produces a floating result; never cast back to int.
    out_dtype = x.dtype if jnp.issubdtype(x.dtype, jnp.floating) else jnp.float32

    tile_budget, vmem_limit, min_parallel_steps, triple_buffer = _hw_config()

    hw = H * W
    if hw % 128 == 0:
        # Main path: one row per (batch, channel) plane, lane-dense last dim.
        rows, lanes = N * C, hw
        x2 = x.reshape(rows, lanes)
        params = jnp.stack([jnp.tile(scale_c, N), jnp.tile(bias_c, N)], axis=1)
        channel_major = False
    else:
        # Small / non-128-aligned feature maps: repack channel-major so the
        # lane dim (N*H*W) is as large (and as likely 128-aligned) as possible
        # instead of silently emitting masked vst.msk stores.  The two
        # physical transposes cost an extra HBM round trip each; prefer
        # 128-aligned H*W or consumer fusion when it matters.
        rows, lanes = C, N * hw
        x2 = jnp.transpose(x, (1, 0, 2, 3)).reshape(rows, lanes)
        params = jnp.stack([scale_c, bias_c], axis=1)
        channel_major = True

    itemsize = max(jnp.dtype(x.dtype).itemsize, jnp.dtype(out_dtype).itemsize)
    tr, tl = _pick_tiles(rows, lanes, itemsize, tile_budget, min_parallel_steps)
    grid = (pl.cdiv(rows, tr), pl.cdiv(lanes, tl))

    # Deeper buffering only pays on v7x where per-tile DMA time is short.
    x_pipe = dict(pipeline_mode=pl.Buffered(3)) if triple_buffer else {}
    in_specs = [
        pl.BlockSpec((tr, 2), lambda i, j: (i, 0)),              # packed scale/bias
        pl.BlockSpec((tr, tl), lambda i, j: (i, j), **x_pipe),   # x tile
    ]
    out_spec = pl.BlockSpec((tr, tl), lambda i, j: (i, j), **x_pipe)

    # Optional in-place: halves peak HBM footprint (not bandwidth) when the
    # un-normalized activation is dead after this layer.
    aliases = {}
    if donate_input and out_dtype == x.dtype and not channel_major:
        aliases = {1: 0}

    out2 = pl.pallas_call(
        _normalize_kernel,
        out_shape=jax.ShapeDtypeStruct((rows, lanes), out_dtype),
        grid=grid,
        in_specs=in_specs,
        out_specs=out_spec,
        input_output_aliases=aliases,
        compiler_params=pltpu.CompilerParams(
            dimension_semantics=("parallel", "parallel"),
            vmem_limit_bytes=vmem_limit,
        ),
    )(params, x2)

    if channel_major:
        return out2.reshape(C, N, H, W).transpose(1, 0, 2, 3)
    return out2.reshape(N, C, H, W)


if __name__ == "__main__":
    # Deterministic parameters, exactly as in the module's __init__.
    mean = jnp.array([0.5, 0.5, 0.5], dtype=jnp.float32)
    std = jnp.array([0.5, 0.5, 0.5], dtype=jnp.float32)

    key = jax.random.PRNGKey(0)

    # Main lane-dense path (H*W multiple of 128).
    x = jax.random.uniform(key, (2, 3, 16, 16), dtype=jnp.float32)
    out = jax.block_until_ready(normalize_layer(x, mean, std))
    ref = (x - mean[None, :, None, None]) / std[None, :, None, None]
    assert out.shape == x.shape and out.dtype == x.dtype
    assert jnp.allclose(out, ref, atol=1e-5, rtol=1e-5)

    # Non-128-aligned spatial dims exercise the channel-major fallback path.
    x_small = jax.random.uniform(jax.random.PRNGKey(0), (2, 3, 7, 7), dtype=jnp.float32)
    out_small = jax.block_until_ready(normalize_layer(x_small, mean, std))
    ref_small = (x_small - mean[None, :, None, None]) / std[None, :, None, None]
    assert out_small.shape == x_small.shape
    assert jnp.allclose(out_small, ref_small, atol=1e-5, rtol=1e-5)

    # Integer (uint8 image) input: result must be floating, not cast back.
    x_u8 = (x * 255.0).astype(jnp.uint8)
    out_u8 = jax.block_until_ready(normalize_layer(x_u8, mean, std))
    ref_u8 = (x_u8.astype(jnp.float32) - mean[None, :, None, None]) / std[None, :, None, None]
    assert out_u8.dtype == jnp.float32
    assert jnp.allclose(out_u8, ref_u8, atol=1e-4, rtol=1e-5)

    print("KERNEL_OK")
</pallas_src>

<mosaic_0001>
module attributes {stable_mosaic.version = 11 : i64} {
  func.func @_normalize_kernel(%arg0: i32, %arg1: i32, %arg2: memref<6x2xf32, #tpu.memory_space<vmem>>, %arg3: memref<6x256xf32, #tpu.memory_space<vmem>>, %arg4: memref<6x256xf32, #tpu.memory_space<vmem>>) attributes {dimension_semantics = [#tpu.dimension_semantics<parallel>, #tpu.dimension_semantics<parallel>], iteration_bounds = array<i64: 1, 1>, scalar_prefetch = 0 : i64, scratch_operands = 0 : i64, tpu.core_type = #tpu.core_type<tc>, window_params = [{transform_indices = @transform_0, window_bounds = array<i64: 6, 2>}, {transform_indices = @transform_1, window_bounds = array<i64: 6, 256>}, {transform_indices = @transform_2, window_bounds = array<i64: 6, 256>}]} {
    %c0 = arith.constant 0 : index
    %c0_0 = arith.constant 0 : index
    %0 = vector.load %arg2[%c0, %c0_0] : memref<6x2xf32, #tpu.memory_space<vmem>>, vector<6x1xf32>
    %c0_1 = arith.constant 0 : index
    %c1 = arith.constant 1 : index
    %1 = vector.load %arg2[%c0_1, %c1] : memref<6x2xf32, #tpu.memory_space<vmem>>, vector<6x1xf32>
    %c0_2 = arith.constant 0 : index
    %c0_3 = arith.constant 0 : index
    %2 = vector.load %arg3[%c0_2, %c0_3] : memref<6x256xf32, #tpu.memory_space<vmem>>, vector<6x256xf32>
    %3 = vector.broadcast %0 : vector<6x1xf32> to vector<6x256xf32>
    %4 = arith.mulf %2, %3 : vector<6x256xf32>
    %5 = vector.broadcast %1 : vector<6x1xf32> to vector<6x256xf32>
    %6 = arith.addf %4, %5 : vector<6x256xf32>
    %c0_4 = arith.constant 0 : index
    %c0_5 = arith.constant 0 : index
    %7 = vector.load %arg4[%c0_4, %c0_5] : memref<6x256xf32, #tpu.memory_space<vmem>>, vector<6x256xf32>
    tpu.vector_store %arg4[%c0_4, %c0_5], %6 {strides = array<i32>} : memref<6x256xf32, #tpu.memory_space<vmem>>, vector<6x256xf32>,
    return
  }
  func.func @transform_0(%arg0: i32, %arg1: i32) -> (i32, i32) {
    %c0_i32 = arith.constant 0 : i32
    %c0_i32_0 = arith.constant 0 : i32
    return %arg0, %c0_i32 : i32, i32
  }
  func.func @transform_1(%arg0: i32, %arg1: i32) -> (i32, i32) {
    %c0_i32 = arith.constant 0 : i32
    return %arg0, %arg1 : i32, i32
  }
  func.func @transform_2(%arg0: i32, %arg1: i32) -> (i32, i32) {
    %c0_i32 = arith.constant 0 : i32
    return %arg0, %arg1 : i32, i32
  }
}

</mosaic_0001>

<llo_original>
// kernel: tpu_custom_call.1
$region0: #{tpu_custom_call.1}
  #allocation0 [shape = 'u32[]', space=smem, size = 0x4, offset = 0x4, fixed_abs, tag = 'smem constant byte address 0x4 - core index']
  #allocation1 [shape = 'u32[144,128]{1,0:T(1,128)}', space=vmem, size = 0x12000, scoped, tag = 'internal scratch']
  %s0 = inlined_call_operand.vmem [shape: f32[6,2], index: 0, kind: input, shape index: {}]
  %s1 = inlined_call_operand.hbm [shape: f32[6,256], index: 1, kind: input, shape index: {}]
  %s2 = inlined_call_operand.hbm [shape: f32[6,256], index: 2, kind: output, shape index: {}]
  %s3 = sld [smem:[#allocation0]]
  $region22: #{tpu_custom_call.1} parent=0
    _
  %s5 = ssub.s32 1, %s3
  %s6 = scalar_select 0, %s5, %s3
  $region1: #{tpu_custom_call.1} parent=0
    #allocation2 [shape = 'u8[8192]{0}', space=vmem, size = 0x2000, scoped, tag = 'input window, operand 1, single buffered']
    #allocation3 [shape = 's32[1]{0}', space=sflag, size = 0x4, scoped, tag = 'scoped memory for tpu_custom_call.1']
    #allocation4 [shape = 's32[1]{0}', space=sflag, size = 0x4, scoped, tag = 'scoped memory for tpu_custom_call.1']
    #allocation5 [shape = 'u8[8192]{0}', space=vmem, size = 0x2000, scoped, tag = 'output window, operand 0, single buffered']
    %7 = vsyncpa [#allocation3], 0
    %8 = vsyncpa [#allocation4], 0
    // Predicated region
    $region2: #{tpu_custom_call.1} parent=1 // pred_check
      _
    $region3: #{tpu_custom_call.1} parent=1 // pred_check_branch
      %10 = sbr.rel (0) target = $region5
    $region4: #{tpu_custom_call.1} parent=1 // pred_region
      _
    $region5: #{tpu_custom_call.1} parent=1 // pred_fallthru
      _
    // Predicated region
    $region6: #{tpu_custom_call.1} parent=1 // pred_check
      _
    $region7: #{tpu_custom_call.1} parent=1 // pred_check_branch
      %12 = sbr.rel (0) target = $region9
    $region8: #{tpu_custom_call.1} parent=1 // pred_region
      %s14 = ssub.s32 256, 256
      %15 = vsyncadd [#allocation3], %s14
      %s17 = sshll.u32 [#allocation2], 4
      %s18 = int_to_ptr.vmem [resolvable:$true] %s17
      %20 = dma.hbm_to_vmem [thread:$0]  %s1, 256, %s18, [#allocation3]
    $region9: #{tpu_custom_call.1} parent=1 // pred_fallthru
      _
    // Predicated region
    $region10: #{tpu_custom_call.1} parent=1 // pred_check
      _
    $region11: #{tpu_custom_call.1} parent=1 // pred_check_branch
      %22 = sbr.rel (0) target = $region13
    $region12: #{tpu_custom_call.1} parent=1 // pred_region
      %23 = dma.done [#allocation3], 256
    $region13: #{tpu_custom_call.1} parent=1 // pred_fallthru
      _
    %v24 = vld [vmem:[%s0] sm:$0x3f]
    %v25 = vld [vmem:[#allocation2] sm:$0x3f]
    %v26 = vld [vmem:[#allocation2 + $0x8] sm:$0x3f]
    %28 = vset.pattern.permute.xlu0 0
    %29 = vperm.xlu0 %28, %v24
    %v30 = vpop.permute.xlu0 %29
    %v32 = vmul.f32 %v25, %v30
    %v33 = vmul.f32 %v26, %v30
    %34 = vset.pattern.permute.xlu0 1
    %35 = vperm.xlu0 %34, %v24
    %v36 = vpop.permute.xlu0 %35
    %v38 = vadd.f32 %v32, %v36
    %v39 = vadd.f32 %v33, %v36
    %40 = vst [vmem:[#allocation5] sm:$0x3f] %v38
    %41 = vst [vmem:[#allocation5 + $0x8] sm:$0x3f] %v39
    // Predicated region
    $region14: #{tpu_custom_call.1} parent=1 // pred_check
      _
    $region15: #{tpu_custom_call.1} parent=1 // pred_check_branch
      %43 = sbr.rel (0) target = $region17
    $region16: #{tpu_custom_call.1} parent=1 // pred_region
      %s45 = ssub.s32 256, 256
      %46 = vsyncadd [#allocation4], %s45
      %s48 = sshll.u32 [#allocation5], 4
      %s49 = int_to_ptr.vmem [resolvable:$true] %s48
      %51 = dma.vmem_to_hbm [thread:$0]  %s49, 256, %s2, [#allocation4]
    $region17: #{tpu_custom_call.1} parent=1 // pred_fallthru
      _
    // Predicated region
    $region18: #{tpu_custom_call.1} parent=1 // pred_check
      _
    $region19: #{tpu_custom_call.1} parent=1 // pred_check_branch
      %53 = sbr.rel (0) target = $region21
    $region20: #{tpu_custom_call.1} parent=1 // pred_region
      %54 = dma.done [#allocation4], 256
    $region21: #{tpu_custom_call.1} parent=1 // pred_fallthru
      _
    %55 = vsyncpa [#allocation3], 1
    %56 = vsyncpa [#allocation4], 1

</llo_original>
